<compile_context>
chip_gen: v6e
topology: v6e:2x2x1
jax: 0.10.0
libtpu: 0.0.40
codegen_flags: <defaults>
</compile_context>

<pallas_src>
import functools

import numpy as np
import jax
import jax.numpy as jnp
from jax import lax
from jax.experimental import pallas as pl
from jax.experimental.pallas import tpu as pltpu

PARAMS = {
    'maxpoolz': 1, 'maxpoolxy': 7, 'maxpoolpadz': 0, 'maxpoolpadxy': 3,
    'convz': 1, 'convxy': 3, 'convsigmaxy': 3, 'convsigmaz': 1,
    'convpadz': 0, 'convpadxy': 1,
}


# --------------------------------------------------------------------------
# Deterministic parameter construction (same math as the PyTorch module init)
# --------------------------------------------------------------------------
def get_2d_gaussian_kernel(ksize, sigma):
    center = ksize // 2
    xs = np.arange(ksize, dtype=np.float32) - center
    k1 = np.exp(-xs ** 2 / (2 * sigma ** 2))
    k = k1[:, None] @ k1[None, :]
    return k / k.sum()


def get_3d_gaussian_kernel(ksize, depth, sigma, zsigma):
    k2 = get_2d_gaussian_kernel(ksize, sigma)
    zs = np.arange(depth, dtype=np.float32) - depth // 2
    zk = np.exp(-zs ** 2 / (2 * zsigma ** 2))
    k3 = np.repeat(k2[None, :, :], depth, axis=0) * zk[:, None, None]
    return k3 / k3.sum()


# --------------------------------------------------------------------------
# Pallas kernel: one batch element per grid step
# --------------------------------------------------------------------------
def _shift(v, k, axis, fill):
    """result[..., j, ...] = v[..., j + k, ...] along `axis`; out-of-range -> fill."""
    size = v.shape[axis]
    assert 0 < abs(k) < size
    pad_shape = list(v.shape)
    pad_shape[axis] = abs(k)
    pad = jnp.full(pad_shape, fill, dtype=v.dtype)
    if k > 0:
        body = lax.slice_in_dim(v, k, size, axis=axis)
        return lax.concatenate([body, pad], axis)
    body = lax.slice_in_dim(v, 0, size + k, axis=axis)
    return lax.concatenate([pad, body], axis)


def _grid2image_kernel(x_ref, out_ref, *, c0, c1):
    # x_ref : (D, H, W) float32 (one batch element)
    # out_ref: (H, W) float32 (single channel; repeat happens in the wrapper)
    neg_inf = float('-inf')
    x = x_ref[...]

    def pool7(v, axis):
        # Centered 7-tap running max with -inf padding, decomposed into two
        # 3-tap levels: offsets {-1,0,1} then {-2,0,2}  (4 shifts + 4 maxes).
        w3 = jnp.maximum(jnp.maximum(_shift(v, -1, axis, neg_inf), v),
                         _shift(v, 1, axis, neg_inf))
        return jnp.maximum(jnp.maximum(_shift(w3, -2, axis, neg_inf), w3),
                           _shift(w3, 2, axis, neg_inf))

    def blur3(v, axis):
        # Centered 3-tap Gaussian with zero padding (symmetric taps c0, c1, c0).
        return c1 * v + c0 * (_shift(v, -1, axis, 0.0) + _shift(v, 1, axis, 0.0))

    # 1) MaxPool3d((1,7,7), stride 1, pad (0,3,3)) — separable spatial max.
    mp = pool7(pool7(x, axis=2), axis=1)

    # 2) Gaussian Conv3d (depth-1 kernel) — separable 1D passes, zero padding.
    #    Conv bias is 0 in the module init -> nothing to add.
    sm = blur3(blur3(mp, axis=2), axis=1)

    # 3) max over depth, per-batch max-normalization, 1 - img.
    img = jnp.max(sm, axis=0)          # (H, W)
    mval = jnp.max(img)                # scalar per batch (channel == 1)
    # NOTE: division by mval with no guard matches the reference semantics
    # (NaN/Inf only if the image is identically zero).
    out_ref[...] = (1.0 - img * (1.0 / mval)).astype(out_ref.dtype)


def grid2image(x):
    """x: [B, D, H, W] float32  ->  [B, 3, H, W] float32."""
    B, D, H, W = x.shape

    # Separable 1D Gaussian taps (the 3x3 kernel is outer(c, c), c = k1/sum(k1)).
    sigma = float(PARAMS['convsigmaxy'])
    ksize = PARAMS['convxy']
    xs = np.arange(ksize, dtype=np.float32) - ksize // 2
    k1 = np.exp(-xs ** 2 / (2 * sigma ** 2))
    c = k1 / k1.sum()
    c0, c1 = float(c[0]), float(c[1])

    kernel = functools.partial(_grid2image_kernel, c0=c0, c1=c1)

    img = pl.pallas_call(
        kernel,
        out_shape=jax.ShapeDtypeStruct((B, H, W), jnp.float32),
        grid=(B,),
        in_specs=[pl.BlockSpec((None, D, H, W), lambda b: (b, 0, 0, 0))],
        out_specs=pl.BlockSpec((None, H, W), lambda b: (b, 0, 0)),
        compiler_params=pltpu.CompilerParams(dimension_semantics=("parallel",)),
    )(x.astype(jnp.float32))

    # 3-channel repeat done outside the kernel (3x less kernel writeback).
    return jnp.broadcast_to(img[:, None, :, :], (B, 3, H, W))


# --------------------------------------------------------------------------
# Pure-JAX reference (for a correctness check)
# --------------------------------------------------------------------------
def grid2image_ref(x):
    B, D, H, W = x.shape
    k = PARAMS['maxpoolxy']
    p = PARAMS['maxpoolpadxy']
    mp = lax.reduce_window(x.astype(jnp.float32), -jnp.inf, lax.max,
                           window_dimensions=(1, 1, k, k),
                           window_strides=(1, 1, 1, 1),
                           padding=((0, 0), (0, 0), (p, p), (p, p)))
    w3d = get_3d_gaussian_kernel(PARAMS['convxy'], PARAMS['convz'],
                                 PARAMS['convsigmaxy'], PARAMS['convsigmaz'])
    w = jnp.asarray(w3d[0], dtype=jnp.float32)[None, None]   # (1,1,3,3)
    y = lax.conv_general_dilated(mp.reshape(B * D, 1, H, W), w,
                                 window_strides=(1, 1),
                                 padding=((1, 1), (1, 1)),
                                 dimension_numbers=('NCHW', 'OIHW', 'NCHW'))
    y = y.reshape(B, D, H, W)
    img = jnp.max(y, axis=1)                                  # (B, H, W)
    m = jnp.max(img, axis=(1, 2), keepdims=True)
    img = 1.0 - img / m
    return jnp.broadcast_to(img[:, None, :, :], (B, 3, H, W))


if __name__ == "__main__":
    key = jax.random.PRNGKey(0)
    B, D, R = 2, 4, 16                    # small shapes: batch, depth, resolution
    x = jax.random.uniform(key, (B, D, R, R), dtype=jnp.float32)

    out = grid2image(x)
    jax.block_until_ready(out)

    ref = grid2image_ref(x)
    assert out.shape == (B, 3, R, R) and out.dtype == jnp.float32
    np.testing.assert_allclose(np.asarray(out), np.asarray(ref), atol=1e-5, rtol=1e-5)

    print("KERNEL_OK")
</pallas_src>

<mosaic_0001>
module attributes {stable_mosaic.version = 11 : i64} {
  func.func @_grid2image_kernel(%arg0: i32, %arg1: memref<1x4x16x16xf32, #tpu.memory_space<vmem>>, %arg2: memref<1x16x16xf32, #tpu.memory_space<vmem>>) attributes {dimension_semantics = [#tpu.dimension_semantics<parallel>], iteration_bounds = array<i64: 2>, scalar_prefetch = 0 : i64, scratch_operands = 0 : i64, tpu.core_type = #tpu.core_type<tc>, window_params = [{transform_indices = @transform_0, window_bounds = array<i64: 1, 4, 16, 16>}, {transform_indices = @transform_1, window_bounds = array<i64: 1, 16, 16>}]} {
    %c0 = arith.constant 0 : index
    %c0_0 = arith.constant 0 : index
    %c0_1 = arith.constant 0 : index
    %c0_2 = arith.constant 0 : index
    %0 = vector.load %arg1[%c0, %c0_0, %c0_1, %c0_2] : memref<1x4x16x16xf32, #tpu.memory_space<vmem>>, vector<1x4x16x16xf32>
    %1 = vector.shape_cast %0 : vector<1x4x16x16xf32> to vector<4x16x16xf32>
    %cst = arith.constant 0xFF800000 : f32
    %2 = vector.broadcast %cst : f32 to vector<4x16x1xf32>
    %3 = vector.extract_strided_slice %1 {offsets = [0, 0, 0], sizes = [4, 16, 15], strides = [1, 1, 1]} : vector<4x16x16xf32> to vector<4x16x15xf32>
    %4 = tpu.concatenate %2, %3 in 2 : vector<4x16x1xf32>, vector<4x16x15xf32> -> vector<4x16x16xf32>
    %5 = arith.maximumf %4, %1 : vector<4x16x16xf32>
    %cst_3 = arith.constant 0xFF800000 : f32
    %6 = vector.broadcast %cst_3 : f32 to vector<4x16x1xf32>
    %7 = vector.extract_strided_slice %1 {offsets = [0, 0, 1], sizes = [4, 16, 15], strides = [1, 1, 1]} : vector<4x16x16xf32> to vector<4x16x15xf32>
    %8 = tpu.concatenate %7, %6 in 2 : vector<4x16x15xf32>, vector<4x16x1xf32> -> vector<4x16x16xf32>
    %9 = arith.maximumf %5, %8 : vector<4x16x16xf32>
    %cst_4 = arith.constant 0xFF800000 : f32
    %10 = vector.broadcast %cst_4 : f32 to vector<4x16x2xf32>
    %11 = vector.extract_strided_slice %9 {offsets = [0, 0, 0], sizes = [4, 16, 14], strides = [1, 1, 1]} : vector<4x16x16xf32> to vector<4x16x14xf32>
    %12 = tpu.concatenate %10, %11 in 2 : vector<4x16x2xf32>, vector<4x16x14xf32> -> vector<4x16x16xf32>
    %13 = arith.maximumf %12, %9 : vector<4x16x16xf32>
    %cst_5 = arith.constant 0xFF800000 : f32
    %14 = vector.broadcast %cst_5 : f32 to vector<4x16x2xf32>
    %15 = vector.extract_strided_slice %9 {offsets = [0, 0, 2], sizes = [4, 16, 14], strides = [1, 1, 1]} : vector<4x16x16xf32> to vector<4x16x14xf32>
    %16 = tpu.concatenate %15, %14 in 2 : vector<4x16x14xf32>, vector<4x16x2xf32> -> vector<4x16x16xf32>
    %17 = arith.maximumf %13, %16 : vector<4x16x16xf32>
    %cst_6 = arith.constant 0xFF800000 : f32
    %18 = vector.broadcast %cst_6 : f32 to vector<4x1x16xf32>
    %19 = vector.extract_strided_slice %17 {offsets = [0, 0, 0], sizes = [4, 15, 16], strides = [1, 1, 1]} : vector<4x16x16xf32> to vector<4x15x16xf32>
    %20 = tpu.concatenate %18, %19 in 1 : vector<4x1x16xf32>, vector<4x15x16xf32> -> vector<4x16x16xf32>
    %21 = arith.maximumf %20, %17 : vector<4x16x16xf32>
    %cst_7 = arith.constant 0xFF800000 : f32
    %22 = vector.broadcast %cst_7 : f32 to vector<4x1x16xf32>
    %23 = vector.extract_strided_slice %17 {offsets = [0, 1, 0], sizes = [4, 15, 16], strides = [1, 1, 1]} : vector<4x16x16xf32> to vector<4x15x16xf32>
    %24 = tpu.concatenate %23, %22 in 1 : vector<4x15x16xf32>, vector<4x1x16xf32> -> vector<4x16x16xf32>
    %25 = arith.maximumf %21, %24 : vector<4x16x16xf32>
    %cst_8 = arith.constant 0xFF800000 : f32
    %26 = vector.broadcast %cst_8 : f32 to vector<4x2x16xf32>
    %27 = vector.extract_strided_slice %25 {offsets = [0, 0, 0], sizes = [4, 14, 16], strides = [1, 1, 1]} : vector<4x16x16xf32> to vector<4x14x16xf32>
    %28 = tpu.concatenate %26, %27 in 1 : vector<4x2x16xf32>, vector<4x14x16xf32> -> vector<4x16x16xf32>
    %29 = arith.maximumf %28, %25 : vector<4x16x16xf32>
    %cst_9 = arith.constant 0xFF800000 : f32
    %30 = vector.broadcast %cst_9 : f32 to vector<4x2x16xf32>
    %31 = vector.extract_strided_slice %25 {offsets = [0, 2, 0], sizes = [4, 14, 16], strides = [1, 1, 1]} : vector<4x16x16xf32> to vector<4x14x16xf32>
    %32 = tpu.concatenate %31, %30 in 1 : vector<4x14x16xf32>, vector<4x2x16xf32> -> vector<4x16x16xf32>
    %33 = arith.maximumf %29, %32 : vector<4x16x16xf32>
    %cst_10 = arith.constant 0.345791161 : f32
    %34 = vector.broadcast %cst_10 : f32 to vector<4x16x16xf32>
    %35 = arith.mulf %34, %33 : vector<4x16x16xf32>
    %cst_11 = arith.constant 0.000000e+00 : f32
    %36 = vector.broadcast %cst_11 : f32 to vector<4x16x1xf32>
    %37 = vector.extract_strided_slice %33 {offsets = [0, 0, 0], sizes = [4, 16, 15], strides = [1, 1, 1]} : vector<4x16x16xf32> to vector<4x16x15xf32>
    %38 = tpu.concatenate %36, %37 in 2 : vector<4x16x1xf32>, vector<4x16x15xf32> -> vector<4x16x16xf32>
    %cst_12 = arith.constant 0.000000e+00 : f32
    %39 = vector.broadcast %cst_12 : f32 to vector<4x16x1xf32>
    %40 = vector.extract_strided_slice %33 {offsets = [0, 0, 1], sizes = [4, 16, 15], strides = [1, 1, 1]} : vector<4x16x16xf32> to vector<4x16x15xf32>
    %41 = tpu.concatenate %40, %39 in 2 : vector<4x16x15xf32>, vector<4x16x1xf32> -> vector<4x16x16xf32>
    %42 = arith.addf %38, %41 : vector<4x16x16xf32>
    %cst_13 = arith.constant 0.327104419 : f32
    %43 = vector.broadcast %cst_13 : f32 to vector<4x16x16xf32>
    %44 = arith.mulf %43, %42 : vector<4x16x16xf32>
    %45 = arith.addf %35, %44 : vector<4x16x16xf32>
    %cst_14 = arith.constant 0.345791161 : f32
    %46 = vector.broadcast %cst_14 : f32 to vector<4x16x16xf32>
    %47 = arith.mulf %46, %45 : vector<4x16x16xf32>
    %cst_15 = arith.constant 0.000000e+00 : f32
    %48 = vector.broadcast %cst_15 : f32 to vector<4x1x16xf32>
    %49 = vector.extract_strided_slice %45 {offsets = [0, 0, 0], sizes = [4, 15, 16], strides = [1, 1, 1]} : vector<4x16x16xf32> to vector<4x15x16xf32>
    %50 = tpu.concatenate %48, %49 in 1 : vector<4x1x16xf32>, vector<4x15x16xf32> -> vector<4x16x16xf32>
    %cst_16 = arith.constant 0.000000e+00 : f32
    %51 = vector.broadcast %cst_16 : f32 to vector<4x1x16xf32>
    %52 = vector.extract_strided_slice %45 {offsets = [0, 1, 0], sizes = [4, 15, 16], strides = [1, 1, 1]} : vector<4x16x16xf32> to vector<4x15x16xf32>
    %53 = tpu.concatenate %52, %51 in 1 : vector<4x15x16xf32>, vector<4x1x16xf32> -> vector<4x16x16xf32>
    %54 = arith.addf %50, %53 : vector<4x16x16xf32>
    %cst_17 = arith.constant 0.327104419 : f32
    %55 = vector.broadcast %cst_17 : f32 to vector<4x16x16xf32>
    %56 = arith.mulf %55, %54 : vector<4x16x16xf32>
    %57 = arith.addf %47, %56 : vector<4x16x16xf32>
    %cst_18 = arith.constant dense<0xFF800000> : vector<16x16xf32>
    %58 = vector.multi_reduction <maximumf>, %57, %cst_18 [0] : vector<4x16x16xf32> to vector<16x16xf32>
    %59 = vector.shape_cast %58 : vector<16x16xf32> to vector<1x16x16xf32>
    %cst_19 = arith.constant dense<0xFF800000> : vector<1xf32>
    %60 = vector.multi_reduction <maximumf>, %59, %cst_19 [1, 2] : vector<1x16x16xf32> to vector<1xf32>
    %61 = vector.shape_cast %60 : vector<1xf32> to vector<1x1x1xf32>
    %62 = vector.extract %61[0, 0, 0] : f32 from vector<1x1x1xf32>
    %cst_20 = arith.constant 1.000000e+00 : f32
    %63 = arith.divf %cst_20, %62 : f32
    %64 = vector.broadcast %63 : f32 to vector<16x16xf32>
    %65 = arith.mulf %58, %64 : vector<16x16xf32>
    %cst_21 = arith.constant 1.000000e+00 : f32
    %66 = vector.broadcast %cst_21 : f32 to vector<16x16xf32>
    %67 = arith.subf %66, %65 : vector<16x16xf32>
    %c0_22 = arith.constant 0 : index
    %c0_23 = arith.constant 0 : index
    %c0_24 = arith.constant 0 : index
    %68 = vector.load %arg2[%c0_22, %c0_23, %c0_24] : memref<1x16x16xf32, #tpu.memory_space<vmem>>, vector<1x16x16xf32>
    %69 = vector.shape_cast %68 : vector<1x16x16xf32> to vector<16x16xf32>
    %70 = vector.shape_cast %67 : vector<16x16xf32> to vector<1x16x16xf32>
    tpu.vector_store %arg2[%c0_22, %c0_23, %c0_24], %70 {strides = array<i32>} : memref<1x16x16xf32, #tpu.memory_space<vmem>>, vector<1x16x16xf32>,
    return
  }
  func.func @transform_0(%arg0: i32) -> (i32, i32, i32, i32) {
    %c0_i32 = arith.constant 0 : i32
    %c0_i32_0 = arith.constant 0 : i32
    %c0_i32_1 = arith.constant 0 : i32
    %c0_i32_2 = arith.constant 0 : i32
    return %arg0, %c0_i32, %c0_i32_0, %c0_i32_1 : i32, i32, i32, i32
  }
  func.func @transform_1(%arg0: i32) -> (i32, i32, i32) {
    %c0_i32 = arith.constant 0 : i32
    %c0_i32_0 = arith.constant 0 : i32
    %c0_i32_1 = arith.constant 0 : i32
    return %arg0, %c0_i32, %c0_i32_0 : i32, i32, i32
  }
}

</mosaic_0001>

<llo_original>
// kernel: tpu_custom_call.1
$region0: #{tpu_custom_call.1}
  #allocation0 [shape = 'u32[]', space=smem, size = 0x4, offset = 0x4, fixed_abs, tag = 'smem constant byte address 0x4 - core index']
  #allocation1 [shape = 'u32[144,128]{1,0:T(1,128)}', space=vmem, size = 0x12000, scoped, tag = 'internal scratch']
  %s0 = inlined_call_operand.hbm [shape: f32[2,4,16,16], index: 0, kind: input, shape index: {}]
  %s1 = inlined_call_operand.hbm [shape: f32[2,16,16], index: 1, kind: output, shape index: {}]
  %s2 = sld [smem:[#allocation0]]
  $region41: #{tpu_custom_call.1} parent=0
    _
  %s4 = ssub.s32 1, %s2
  %s5 = scalar_select 0, %s4, %s2
  $region1: #{tpu_custom_call.1} parent=0
    #allocation2 [shape = 'u8[65536]{0}', space=vmem, size = 0x10000, scoped, tag = 'input window, operand 0']
    #allocation3 [shape = 's32[2]{0}', space=sflag, size = 0x8, scoped, tag = 'scoped memory for tpu_custom_call.1']
    #allocation4 [shape = 's32[2]{0}', space=sflag, size = 0x8, scoped, tag = 'scoped memory for tpu_custom_call.1']
    #allocation5 [shape = 'u8[16384]{0}', space=vmem, size = 0x4000, scoped, tag = 'output window, operand 0']
    %6 = vsyncpa [#allocation3], 0
    %s7 = scalar_lea.sflag [#allocation3], 1
    %8 = vsyncpa %s7, 0
    %9 = vsyncpa [#allocation4], 0
    %s10 = scalar_lea.sflag [#allocation4], 1
    %11 = vsyncpa %s10, 0
    loop: start=0, step=1, limit=4
    $region2: #{tpu_custom_call.1} parent=1 // loop_pre_header
      _
    $region3: #{tpu_custom_call.1} parent=1 // loop_header
      %s13 = sphi 0, %s17
      %p14 = scmp.ge.s32.totalorder %s13, 4
      %s23 = sphi 0, %s25
      %s26 = sphi 0, %s23
      %s27 = sphi 0, %s26
      %s43 = sphi 0, %s27
      %s49 = sphi 0, %s51
      %s52 = sphi 0, %s49
      %s53 = sphi 0, %s52
      %s69 = sphi 0, %s53
    $region4: #{tpu_custom_call.1} parent=1 // loop_header_branch
      %16 = sbr.rel (%p14) target = $region8
    $region5: #{tpu_custom_call.1} parent=1 // loop_body
      %s18 = ssub.s32 %s13, 1
      %s19 = ssub.s32 %s13, 2
      %s20 = sadd.s32 %s13, 1
      %s21 = ssub.s32 %s13, %s20
      %p22 = scmp.eq.s32.totalorder %s21, 0
      %s24 = sadd.s32 %s23, 1
      %s25 = scalar_select %p22, %s23, %s24
      %p28 = pneg %p22
      %p29 = scmp.eq.s32.totalorder %s13, 1
      %p30 = por %p28, %p29
      %p31 = scmp.ne.s32.totalorder %s23, %s26
      %p32 = scmp.eq.s32.totalorder %s13, 0
      %p33 = por %p31, %p32
      %p34 = scmp.ne.s32.totalorder %s23, %s26
      %p35 = scmp.eq.s32.totalorder %s18, 1
      %p36 = por %p34, %p35
      %p37 = scmp.ne.s32.totalorder %s26, %s27
      %p38 = scmp.eq.s32.totalorder %s18, 0
      %p39 = por %p37, %p38
      %p40 = scmp.ne.s32.totalorder %s26, %s27
      %p41 = scmp.eq.s32.totalorder %s19, 1
      %p42 = por %p40, %p41
      %p44 = scmp.ne.s32.totalorder %s27, %s43
      %p45 = scmp.eq.s32.totalorder %s19, 0
      %p46 = por %p44, %p45
      %s47 = ssub.s32 %s13, %s20
      %p48 = scmp.eq.s32.totalorder %s47, 0
      %s50 = sadd.s32 %s49, 1
      %s51 = scalar_select %p48, %s49, %s50
      %p54 = pneg %p48
      %p55 = scmp.eq.s32.totalorder %s13, 1
      %p56 = por %p54, %p55
      %p57 = scmp.ne.s32.totalorder %s49, %s52
      %p58 = scmp.eq.s32.totalorder %s13, 0
      %p59 = por %p57, %p58
      %p60 = scmp.ne.s32.totalorder %s49, %s52
      %p61 = scmp.eq.s32.totalorder %s18, 1
      %p62 = por %p60, %p61
      %p63 = scmp.ne.s32.totalorder %s52, %s53
      %p64 = scmp.eq.s32.totalorder %s18, 0
      %p65 = por %p63, %p64
      %p66 = scmp.ne.s32.totalorder %s52, %s53
      %p67 = scmp.eq.s32.totalorder %s19, 1
      %p68 = por %p66, %p67
      %p70 = scmp.ne.s32.totalorder %s53, %s69
      %p71 = scmp.eq.s32.totalorder %s19, 0
      %p72 = por %p70, %p71
      %p73 = scmp.le.s32.totalorder 1, %s13
      %p74 = scmp.lt.s32.totalorder %s13, 3
      %p75 = pnand %p73, %p74
      %p76 = pneg %p75
      // Predicated region
      $region9: #{tpu_custom_call.1} parent=5 // pred_check
        _
      $region10: #{tpu_custom_call.1} parent=5 // pred_check_branch
        %78 = sbr.rel (%p75) target = $region12
      $region11: #{tpu_custom_call.1} parent=5 // pred_region
        %s79 = ssub.s32 %s13, 1
      $region12: #{tpu_custom_call.1} parent=5 // pred_fallthru
        _
      %p80 = scmp.lt.s32.totalorder %s13, 2
      // Predicated region
      $region13: #{tpu_custom_call.1} parent=5 // pred_check
        %p81 = pneg %p80
      $region14: #{tpu_custom_call.1} parent=5 // pred_check_branch
        %83 = sbr.rel (%p81) target = $region16
      $region15: #{tpu_custom_call.1} parent=5 // pred_region
        // Predicated region
        $region17: #{tpu_custom_call.1} parent=15 // pred_check
          %p84 = pneg %p33
        $region18: #{tpu_custom_call.1} parent=15 // pred_check_branch
          %86 = sbr.rel (%p84) target = $region20
        $region19: #{tpu_custom_call.1} parent=15 // pred_region
          %s87 = sand.u32 %s23, 1
          %s88 = scalar_lea.sflag [#allocation3], %s87
          %s89 = sand.u32 %s23, 1
          %s90 = smul.addr %s89, 64
          %s91 = scalar_lea.vmem [#allocation2], %s90
          %s93 = ssub.s32 1024, 1024
          %94 = vsyncadd %s88, %s93
          %s95 = smul.addr %s13, 8
          %s96 = smul.addr %s95, 128
          %s97 = scalar_lea.hbm %s0, %s96
          %s98 = sshll.u32 %s91, 4
          %s99 = int_to_ptr.vmem [resolvable:$true] %s98
          %104 = dma.hbm_to_vmem [thread:$0]  %s97, 1024, %s99, %s88, 128, 128, 8
        $region20: #{tpu_custom_call.1} parent=15 // pred_fallthru
          _
      $region16: #{tpu_custom_call.1} parent=5 // pred_fallthru
        _
      %p105 = scmp.le.s32.totalorder 1, %s13
      %p106 = scmp.lt.s32.totalorder %s13, 3
      %p107 = pnand %p105, %p106
      %p108 = pneg %p107
      // Predicated region
      $region21: #{tpu_custom_call.1} parent=5 // pred_check
        _
      $region22: #{tpu_custom_call.1} parent=5 // pred_check_branch
        %110 = sbr.rel (%p107) target = $region24
      $region23: #{tpu_custom_call.1} parent=5 // pred_region
        %s111 = ssub.s32 %s13, 1
        %s112 = sand.u32 %s26, 1
        %s113 = scalar_lea.sflag [#allocation3], %s112
        %s114 = sand.u32 %s26, 1
        %s115 = smul.addr %s114, 64
        %s116 = scalar_lea.vmem [#allocation2], %s115
        // Predicated region
        $region25: #{tpu_custom_call.1} parent=23 // pred_check
          %p117 = pneg %p39
        $region26: #{tpu_custom_call.1} parent=23 // pred_check_branch
          %119 = sbr.rel (%p117) target = $region28
        $region27: #{tpu_custom_call.1} parent=23 // pred_region
          %120 = dma.done %s113, 1024
        $region28: #{tpu_custom_call.1} parent=23 // pred_fallthru
          _
        %s121 = sand.u32 %s26, 1
        %s122 = scalar_lea.sflag [#allocation3], %s121
        %s123 = sand.u32 %s26, 1
        %s124 = smul.addr %s123, 64
        %s125 = scalar_lea.vmem [#allocation2], %s124
        %p126 = pneg %p39
        %p127 = pneg %p36
        %p128 = pneg %p65
        %p129 = pneg %p62
        %s130 = sand.u32 %s52, 1
        %s131 = scalar_lea.sflag [#allocation4], %s130
        %s132 = sand.u32 %s52, 1
        %s133 = smul.addr %s132, 16
        %s134 = scalar_lea.vmem [#allocation5], %s133
        %v135 = vld [vmem:[%s116] sm:$0xff]
        %v136 = vld [vmem:[%s116 + $0x8] sm:$0xff]
        %v137 = vld [vmem:[%s116 + $0x10] sm:$0xff]
        %v138 = vld [vmem:[%s116 + $0x18] sm:$0xff]
        %v139 = vld [vmem:[%s116 + $0x20] sm:$0xff]
        %v140 = vld [vmem:[%s116 + $0x28] sm:$0xff]
        %v141 = vld [vmem:[%s116 + $0x30] sm:$0xff]
        %v142 = vld [vmem:[%s116 + $0x38] sm:$0xff]
        %151 = vrot.lane.b32.xlu0 %v135, 1
        %v152 = vpop.permute.xlu0 %151
        %153 = vrot.lane.b32.xlu0 %v136, 1
        %v154 = vpop.permute.xlu0 %153
        %155 = vrot.lane.b32.xlu0 %v137, 1
        %v156 = vpop.permute.xlu0 %155
        %157 = vrot.lane.b32.xlu0 %v138, 1
        %v158 = vpop.permute.xlu0 %157
        %159 = vrot.lane.b32.xlu0 %v139, 1
        %v160 = vpop.permute.xlu0 %159
        %161 = vrot.lane.b32.xlu0 %v140, 1
        %v162 = vpop.permute.xlu0 %161
        %163 = vrot.lane.b32.xlu0 %v141, 1
        %v164 = vpop.permute.xlu0 %163
        %165 = vrot.lane.b32.xlu0 %v142, 1
        %v166 = vpop.permute.xlu0 %165
        %vm175 = vcmask 7168
        %v176 = vsel %vm175, -inf, %v152
        %v177 = vsel %vm175, -inf, %v154
        %v178 = vsel %vm175, -inf, %v156
        %v179 = vsel %vm175, -inf, %v158
        %v180 = vsel %vm175, -inf, %v160
        %v181 = vsel %vm175, -inf, %v162
        %v182 = vsel %vm175, -inf, %v164
        %v183 = vsel %vm175, -inf, %v166
        %v184 = vmax.f32 %v176, %v135
        %v185 = vmax.f32 %v177, %v136
        %v186 = vmax.f32 %v178, %v137
        %v187 = vmax.f32 %v179, %v138
        %v188 = vmax.f32 %v180, %v139
        %v189 = vmax.f32 %v181, %v140
        %v190 = vmax.f32 %v182, %v141
        %v191 = vmax.f32 %v183, %v142
        %192 = vrot.lane.b32.xlu0 %v135, 127
        %v193 = vpop.permute.xlu0 %192
        %194 = vrot.lane.b32.xlu0 %v136, 127
        %v195 = vpop.permute.xlu0 %194
        %196 = vrot.lane.b32.xlu0 %v137, 127
        %v197 = vpop.permute.xlu0 %196
        %198 = vrot.lane.b32.xlu0 %v138, 127
        %v199 = vpop.permute.xlu0 %198
        %200 = vrot.lane.b32.xlu0 %v139, 127
        %v201 = vpop.permute.xlu0 %200
        %202 = vrot.lane.b32.xlu0 %v140, 127
        %v203 = vpop.permute.xlu0 %202
        %204 = vrot.lane.b32.xlu0 %v141, 127
        %v205 = vpop.permute.xlu0 %204
        %206 = vrot.lane.b32.xlu0 %v142, 127
        %v207 = vpop.permute.xlu0 %206
        %vm216 = vcmask 121856
        %v217 = vsel %vm216, %v193, -inf
        %v218 = vsel %vm216, %v195, -inf
        %v219 = vsel %vm216, %v197, -inf
        %v220 = vsel %vm216, %v199, -inf
        %v221 = vsel %vm216, %v201, -inf
        %v222 = vsel %vm216, %v203, -inf
        %v223 = vsel %vm216, %v205, -inf
        %v224 = vsel %vm216, %v207, -inf
        %v225 = vmax.f32 %v184, %v217
        %v226 = vmax.f32 %v185, %v218
        %v227 = vmax.f32 %v186, %v219
        %v228 = vmax.f32 %v187, %v220
        %v229 = vmax.f32 %v188, %v221
        %v230 = vmax.f32 %v189, %v222
        %v231 = vmax.f32 %v190, %v223
        %v232 = vmax.f32 %v191, %v224
        %241 = vrot.lane.b32.xlu0 %v225, 2
        %v242 = vpop.permute.xlu0 %241
        %243 = vrot.lane.b32.xlu0 %v226, 2
        %v244 = vpop.permute.xlu0 %243
        %245 = vrot.lane.b32.xlu0 %v227, 2
        %v246 = vpop.permute.xlu0 %245
        %247 = vrot.lane.b32.xlu0 %v228, 2
        %v248 = vpop.permute.xlu0 %247
        %249 = vrot.lane.b32.xlu0 %v229, 2
        %v250 = vpop.permute.xlu0 %249
        %251 = vrot.lane.b32.xlu0 %v230, 2
        %v252 = vpop.permute.xlu0 %251
        %253 = vrot.lane.b32.xlu0 %v231, 2
        %v254 = vpop.permute.xlu0 %253
        %255 = vrot.lane.b32.xlu0 %v232, 2
        %v256 = vpop.permute.xlu0 %255
        %vm265 = vcmask 15360
        %v266 = vsel %vm265, -inf, %v242
        %v267 = vsel %vm265, -inf, %v244
        %v268 = vsel %vm265, -inf, %v246
        %v269 = vsel %vm265, -inf, %v248
        %v270 = vsel %vm265, -inf, %v250
        %v271 = vsel %vm265, -inf, %v252
        %v272 = vsel %vm265, -inf, %v254
        %v273 = vsel %vm265, -inf, %v256
        %v274 = vmax.f32 %v266, %v225
        %v275 = vmax.f32 %v267, %v226
        %v276 = vmax.f32 %v268, %v227
        %v277 = vmax.f32 %v269, %v228
        %v278 = vmax.f32 %v270, %v229
        %v279 = vmax.f32 %v271, %v230
        %v280 = vmax.f32 %v272, %v231
        %v281 = vmax.f32 %v273, %v232
        %282 = vrot.lane.b32.xlu0 %v225, 126
        %v283 = vpop.permute.xlu0 %282
        %284 = vrot.lane.b32.xlu0 %v226, 126
        %v285 = vpop.permute.xlu0 %284
        %286 = vrot.lane.b32.xlu0 %v227, 126
        %v287 = vpop.permute.xlu0 %286
        %288 = vrot.lane.b32.xlu0 %v228, 126
        %v289 = vpop.permute.xlu0 %288
        %290 = vrot.lane.b32.xlu0 %v229, 126
        %v291 = vpop.permute.xlu0 %290
        %292 = vrot.lane.b32.xlu0 %v230, 126
        %v293 = vpop.permute.xlu0 %292
        %294 = vrot.lane.b32.xlu0 %v231, 126
        %v295 = vpop.permute.xlu0 %294
        %296 = vrot.lane.b32.xlu0 %v232, 126
        %v297 = vpop.permute.xlu0 %296
        %vm306 = vcmask 113664
        %v307 = vsel %vm306, %v283, -inf
        %v308 = vsel %vm306, %v285, -inf
        %v309 = vsel %vm306, %v287, -inf
        %v310 = vsel %vm306, %v289, -inf
        %v311 = vsel %vm306, %v291, -inf
        %v312 = vsel %vm306, %v293, -inf
        %v313 = vsel %vm306, %v295, -inf
        %v314 = vsel %vm306, %v297, -inf
        %v315 = vmax.f32 %v274, %v307
        %v316 = vmax.f32 %v275, %v308
        %v317 = vmax.f32 %v276, %v309
        %v318 = vmax.f32 %v277, %v310
        %v319 = vmax.f32 %v278, %v311
        %v320 = vmax.f32 %v279, %v312
        %v321 = vmax.f32 %v280, %v313
        %v322 = vmax.f32 %v281, %v314
        %vm331 = vcmask 1040384
        %v332 = vrot.slane %v315, 7
        %v333 = vrot.slane %v316, 7
        %v334 = vsel %vm331, %v332, %v333
        %v335 = vrot.slane %v317, 7
        %v336 = vrot.slane %v318, 7
        %v337 = vsel %vm331, %v335, %v336
        %v338 = vrot.slane %v319, 7
        %v339 = vrot.slane %v320, 7
        %v340 = vsel %vm331, %v338, %v339
        %v341 = vrot.slane %v321, 7
        %v342 = vrot.slane %v322, 7
        %v343 = vsel %vm331, %v341, %v342
        %v352 = vsel %vm331, -inf, %v332
        %v353 = vsel %vm331, -inf, %v335
        %v354 = vsel %vm331, -inf, %v338
        %v355 = vsel %vm331, -inf, %v341
        %v356 = vmax.f32 %v352, %v315
        %v357 = vmax.f32 %v334, %v316
        %v358 = vmax.f32 %v353, %v317
        %v359 = vmax.f32 %v337, %v318
        %v360 = vmax.f32 %v354, %v319
        %v361 = vmax.f32 %v340, %v320
        %v362 = vmax.f32 %v355, %v321
        %v363 = vmax.f32 %v343, %v322
        %vm364 = vcmask 1046528
        %v365 = vrot.slane %v315, 1
        %v366 = vrot.slane %v316, 1
        %v367 = vsel %vm364, %v365, %v366
        %v368 = vrot.slane %v317, 1
        %v369 = vrot.slane %v318, 1
        %v370 = vsel %vm364, %v368, %v369
        %v371 = vrot.slane %v319, 1
        %v372 = vrot.slane %v320, 1
        %v373 = vsel %vm364, %v371, %v372
        %v374 = vrot.slane %v321, 1
        %v375 = vrot.slane %v322, 1
        %v376 = vsel %vm364, %v374, %v375
        %v385 = vsel %vm364, %v366, -inf
        %v386 = vsel %vm364, %v369, -inf
        %v387 = vsel %vm364, %v372, -inf
        %v388 = vsel %vm364, %v375, -inf
        %v389 = vmax.f32 %v356, %v367
        %v390 = vmax.f32 %v357, %v385
        %v391 = vmax.f32 %v358, %v370
        %v392 = vmax.f32 %v359, %v386
        %v393 = vmax.f32 %v360, %v373
        %v394 = vmax.f32 %v361, %v387
        %v395 = vmax.f32 %v362, %v376
        %v396 = vmax.f32 %v363, %v388
        %vm405 = vcmask 1041408
        %v406 = vrot.slane %v389, 6
        %v407 = vrot.slane %v390, 6
        %v408 = vsel %vm405, %v406, %v407
        %v409 = vrot.slane %v391, 6
        %v410 = vrot.slane %v392, 6
        %v411 = vsel %vm405, %v409, %v410
        %v412 = vrot.slane %v393, 6
        %v413 = vrot.slane %v394, 6
        %v414 = vsel %vm405, %v412, %v413
        %v415 = vrot.slane %v395, 6
        %v416 = vrot.slane %v396, 6
        %v417 = vsel %vm405, %v415, %v416
        %v426 = vsel %vm405, -inf, %v406
        %v427 = vsel %vm405, -inf, %v409
        %v428 = vsel %vm405, -inf, %v412
        %v429 = vsel %vm405, -inf, %v415
        %v430 = vmax.f32 %v426, %v389
        %v431 = vmax.f32 %v408, %v390
        %v432 = vmax.f32 %v427, %v391
        %v433 = vmax.f32 %v411, %v392
        %v434 = vmax.f32 %v428, %v393
        %v435 = vmax.f32 %v414, %v394
        %v436 = vmax.f32 %v429, %v395
        %v437 = vmax.f32 %v417, %v396
        %vm438 = vcmask 1045504
        %v439 = vrot.slane %v389, 2
        %v440 = vrot.slane %v390, 2
        %v441 = vsel %vm438, %v439, %v440
        %v442 = vrot.slane %v391, 2
        %v443 = vrot.slane %v392, 2
        %v444 = vsel %vm438, %v442, %v443
        %v445 = vrot.slane %v393, 2
        %v446 = vrot.slane %v394, 2
        %v447 = vsel %vm438, %v445, %v446
        %v448 = vrot.slane %v395, 2
        %v449 = vrot.slane %v396, 2
        %v450 = vsel %vm438, %v448, %v449
        %v459 = vsel %vm438, %v440, -inf
        %v460 = vsel %vm438, %v443, -inf
        %v461 = vsel %vm438, %v446, -inf
        %v462 = vsel %vm438, %v449, -inf
        %v463 = vmax.f32 %v430, %v441
        %v464 = vmax.f32 %v431, %v459
        %v465 = vmax.f32 %v432, %v444
        %v466 = vmax.f32 %v433, %v460
        %v467 = vmax.f32 %v434, %v447
        %v468 = vmax.f32 %v435, %v461
        %v469 = vmax.f32 %v436, %v450
        %v470 = vmax.f32 %v437, %v462
        %v471 = vmul.f32 %v463, 0.34579116
        %v472 = vmul.f32 %v464, 0.34579116
        %v473 = vmul.f32 %v465, 0.34579116
        %v474 = vmul.f32 %v466, 0.34579116
        %v475 = vmul.f32 %v467, 0.34579116
        %v476 = vmul.f32 %v468, 0.34579116
        %v477 = vmul.f32 %v469, 0.34579116
        %v478 = vmul.f32 %v470, 0.34579116
        %487 = vrot.lane.b32.xlu0 %v463, 1
        %v488 = vpop.permute.xlu0 %487
        %489 = vrot.lane.b32.xlu0 %v464, 1
        %v490 = vpop.permute.xlu0 %489
        %491 = vrot.lane.b32.xlu0 %v465, 1
        %v492 = vpop.permute.xlu0 %491
        %493 = vrot.lane.b32.xlu0 %v466, 1
        %v494 = vpop.permute.xlu0 %493
        %495 = vrot.lane.b32.xlu0 %v467, 1
        %v496 = vpop.permute.xlu0 %495
        %497 = vrot.lane.b32.xlu0 %v468, 1
        %v498 = vpop.permute.xlu0 %497
        %499 = vrot.lane.b32.xlu0 %v469, 1
        %v500 = vpop.permute.xlu0 %499
        %501 = vrot.lane.b32.xlu0 %v470, 1
        %v502 = vpop.permute.xlu0 %501
        %v511 = vsel %vm175, 0.0, %v488
        %v512 = vsel %vm175, 0.0, %v490
        %v513 = vsel %vm175, 0.0, %v492
        %v514 = vsel %vm175, 0.0, %v494
        %v515 = vsel %vm175, 0.0, %v496
        %v516 = vsel %vm175, 0.0, %v498
        %v517 = vsel %vm175, 0.0, %v500
        %v518 = vsel %vm175, 0.0, %v502
        %519 = vrot.lane.b32.xlu0 %v463, 127
        %v520 = vpop.permute.xlu0 %519
        %521 = vrot.lane.b32.xlu0 %v464, 127
        %v522 = vpop.permute.xlu0 %521
        %523 = vrot.lane.b32.xlu0 %v465, 127
        %v524 = vpop.permute.xlu0 %523
        %525 = vrot.lane.b32.xlu0 %v466, 127
        %v526 = vpop.permute.xlu0 %525
        %527 = vrot.lane.b32.xlu0 %v467, 127
        %v528 = vpop.permute.xlu0 %527
        %529 = vrot.lane.b32.xlu0 %v468, 127
        %v530 = vpop.permute.xlu0 %529
        %531 = vrot.lane.b32.xlu0 %v469, 127
        %v532 = vpop.permute.xlu0 %531
        %533 = vrot.lane.b32.xlu0 %v470, 127
        %v534 = vpop.permute.xlu0 %533
        %v543 = vsel %vm216, %v520, 0.0
        %v544 = vsel %vm216, %v522, 0.0
        %v545 = vsel %vm216, %v524, 0.0
        %v546 = vsel %vm216, %v526, 0.0
        %v547 = vsel %vm216, %v528, 0.0
        %v548 = vsel %vm216, %v530, 0.0
        %v549 = vsel %vm216, %v532, 0.0
        %v550 = vsel %vm216, %v534, 0.0
        %v551 = vadd.f32 %v511, %v543
        %v552 = vadd.f32 %v512, %v544
        %v553 = vadd.f32 %v513, %v545
        %v554 = vadd.f32 %v514, %v546
        %v555 = vadd.f32 %v515, %v547
        %v556 = vadd.f32 %v516, %v548
        %v557 = vadd.f32 %v517, %v549
        %v558 = vadd.f32 %v518, %v550
        %v559 = vmul.f32 %v551, 0.32710442
        %v560 = vmul.f32 %v552, 0.32710442
        %v561 = vmul.f32 %v553, 0.32710442
        %v562 = vmul.f32 %v554, 0.32710442
        %v563 = vmul.f32 %v555, 0.32710442
        %v564 = vmul.f32 %v556, 0.32710442
        %v565 = vmul.f32 %v557, 0.32710442
        %v566 = vmul.f32 %v558, 0.32710442
        %v567 = vadd.f32 %v471, %v559
        %v568 = vadd.f32 %v472, %v560
        %v569 = vadd.f32 %v473, %v561
        %v570 = vadd.f32 %v474, %v562
        %v571 = vadd.f32 %v475, %v563
        %v572 = vadd.f32 %v476, %v564
        %v573 = vadd.f32 %v477, %v565
        %v574 = vadd.f32 %v478, %v566
        %v575 = vmul.f32 %v567, 0.34579116
        %v576 = vmul.f32 %v568, 0.34579116
        %v577 = vmul.f32 %v569, 0.34579116
        %v578 = vmul.f32 %v570, 0.34579116
        %v579 = vmul.f32 %v571, 0.34579116
        %v580 = vmul.f32 %v572, 0.34579116
        %v581 = vmul.f32 %v573, 0.34579116
        %v582 = vmul.f32 %v574, 0.34579116
        %v591 = vrot.slane %v567, 7
        %v592 = vrot.slane %v568, 7
        %v593 = vsel %vm331, %v591, %v592
        %v594 = vrot.slane %v569, 7
        %v595 = vrot.slane %v570, 7
        %v596 = vsel %vm331, %v594, %v595
        %v597 = vrot.slane %v571, 7
        %v598 = vrot.slane %v572, 7
        %v599 = vsel %vm331, %v597, %v598
        %v600 = vrot.slane %v573, 7
        %v601 = vrot.slane %v574, 7
        %v602 = vsel %vm331, %v600, %v601
        %v611 = vsel %vm331, 0.0, %v591
        %v612 = vsel %vm331, 0.0, %v594
        %v613 = vsel %vm331, 0.0, %v597
        %v614 = vsel %vm331, 0.0, %v600
        %v615 = vrot.slane %v567, 1
        %v616 = vrot.slane %v568, 1
        %v617 = vsel %vm364, %v615, %v616
        %v618 = vrot.slane %v569, 1
        %v619 = vrot.slane %v570, 1
        %v620 = vsel %vm364, %v618, %v619
        %v621 = vrot.slane %v571, 1
        %v622 = vrot.slane %v572, 1
        %v623 = vsel %vm364, %v621, %v622
        %v624 = vrot.slane %v573, 1
        %v625 = vrot.slane %v574, 1
        %v626 = vsel %vm364, %v624, %v625
        %v635 = vsel %vm364, %v616, 0.0
        %v636 = vsel %vm364, %v619, 0.0
        %v637 = vsel %vm364, %v622, 0.0
        %v638 = vsel %vm364, %v625, 0.0
        %v639 = vadd.f32 %v611, %v617
        %v640 = vadd.f32 %v593, %v635
        %v641 = vadd.f32 %v612, %v620
        %v642 = vadd.f32 %v596, %v636
        %v643 = vadd.f32 %v613, %v623
        %v644 = vadd.f32 %v599, %v637
        %v645 = vadd.f32 %v614, %v626
        %v646 = vadd.f32 %v602, %v638
        %v647 = vmul.f32 %v639, 0.32710442
        %v648 = vmul.f32 %v640, 0.32710442
        %v649 = vmul.f32 %v641, 0.32710442
        %v650 = vmul.f32 %v642, 0.32710442
        %v651 = vmul.f32 %v643, 0.32710442
        %v652 = vmul.f32 %v644, 0.32710442
        %v653 = vmul.f32 %v645, 0.32710442
        %v654 = vmul.f32 %v646, 0.32710442
        %v655 = vadd.f32 %v575, %v647
        %v656 = vadd.f32 %v576, %v648
        %v657 = vadd.f32 %v577, %v649
        %v658 = vadd.f32 %v578, %v650
        %v659 = vadd.f32 %v579, %v651
        %v660 = vadd.f32 %v580, %v652
        %v661 = vadd.f32 %v581, %v653
        %v662 = vadd.f32 %v582, %v654
        %vm663 = vcmask 130048
        %v664 = vsel %vm663, %v655, -inf
        %v665 = vsel %vm663, %v657, -inf
        %v666 = vsel %vm663, %v659, -inf
        %v667 = vmax.f32 %v664, %v666
        %v668 = vsel %vm663, %v661, -inf
        %v669 = vmax.f32 %v665, %v668
        %v670 = vmax.f32 %v667, %v669
        %v671 = vsel %vm663, %v656, -inf
        %v672 = vsel %vm663, %v658, -inf
        %v673 = vsel %vm663, %v660, -inf
        %v674 = vmax.f32 %v671, %v673
        %v675 = vsel %vm663, %v662, -inf
        %v676 = vmax.f32 %v672, %v675
        %v677 = vmax.f32 %v674, %v676
        %v678 = vsel %vm663, %v670, -inf
        %v679 = vsel %vm663, %v677, -inf
        %v680 = vmax.f32 %v678, %v679
        %681 = vmax.xlane.f32.xlu0 %v680
        %v682 = vpop.xlane.xlu0 %681
        %v683 = vrot.slane %v682, 4
        %v684 = vmax.f32 %v682, %v683
        %v685 = vrot.slane %v684, 2
        %v686 = vmax.f32 %v684, %v685
        %v687 = vrot.slane %v686, 1
        %v688 = vmax.f32 %v686, %v687
        %s689 = vtos %v688
        %v690 = vstv %s689
        %v691 = vrcp.pop %v690
        %s692 = vtos %v691
        %v693 = vstv %s692
        %v694 = vmul.f32 %v670, %v693
        %v695 = vmul.f32 %v677, %v693
        %v696 = vsub.f32 1.0, %v694
        %v697 = vsub.f32 1.0, %v695
        %698 = vst.msk [vmem:[%s134] sm:$0xff] %vm663, %v696
        %699 = vst.msk [vmem:[%s134 + $0x8] sm:$0xff] %vm663, %v697
        %s700 = sand.u32 %s52, 1
        %s701 = scalar_lea.sflag [#allocation4], %s700
        %s702 = sand.u32 %s52, 1
        %s703 = smul.addr %s702, 16
        %s704 = scalar_lea.vmem [#allocation5], %s703
        // Predicated region
        $region29: #{tpu_custom_call.1} parent=23 // pred_check
          %p705 = pneg %p62
        $region30: #{tpu_custom_call.1} parent=23 // pred_check_branch
          %707 = sbr.rel (%p705) target = $region32
        $region31: #{tpu_custom_call.1} parent=23 // pred_region
          %s709 = ssub.s32 256, 256
          %710 = vsyncadd %s701, %s709
          %s711 = smul.addr %s18, 2
          %s712 = smul.addr %s711, 128
          %s713 = scalar_lea.hbm %s1, %s712
          %s714 = sshll.u32 %s704, 4
          %s715 = int_to_ptr.vmem [resolvable:$true] %s714
          %720 = dma.vmem_to_hbm [thread:$0]  %s715, 256, %s713, %s701, 128, 128, 8
        $region32: #{tpu_custom_call.1} parent=23 // pred_fallthru
          _
      $region24: #{tpu_custom_call.1} parent=5 // pred_fallthru
        _
      %p721 = scmp.le.s32.totalorder 2, %s13
      // Predicated region
      $region33: #{tpu_custom_call.1} parent=5 // pred_check
        %p722 = pneg %p721
      $region34: #{tpu_custom_call.1} parent=5 // pred_check_branch
        %724 = sbr.rel (%p722) target = $region36
      $region35: #{tpu_custom_call.1} parent=5 // pred_region
        %s725 = ssub.s32 %s13, 2
        // Predicated region
        $region37: #{tpu_custom_call.1} parent=35 // pred_check
          %p726 = pneg %p68
        $region38: #{tpu_custom_call.1} parent=35 // pred_check_branch
          %728 = sbr.rel (%p726) target = $region40
        $region39: #{tpu_custom_call.1} parent=35 // pred_region
          %s729 = sand.u32 %s53, 1
          %s730 = scalar_lea.sflag [#allocation4], %s729
          %s731 = sand.u32 %s53, 1
          %s732 = smul.addr %s731, 16
          %s733 = scalar_lea.vmem [#allocation5], %s732
          %734 = dma.done %s730, 256
        $region40: #{tpu_custom_call.1} parent=35 // pred_fallthru
          _
      $region36: #{tpu_custom_call.1} parent=5 // pred_fallthru
        _
    $region6: #{tpu_custom_call.1} parent=1 // loop_footer
      %s17 = sadd.s32 1, %s13
    $region7: #{tpu_custom_call.1} parent=1 // loop_footer_branch
      %12 = sbr.rel target = $region3
    $region8: #{tpu_custom_call.1} parent=1 // loop_exit
      _
    %735 = vsyncpa [#allocation3], 1
    %s736 = scalar_lea.sflag [#allocation3], 1
    %737 = vsyncpa %s736, 1
    %738 = vsyncpa [#allocation4], 1
    %s739 = scalar_lea.sflag [#allocation4], 1
    %740 = vsyncpa %s739, 1

</llo_original>
